<compile_context>
chip_gen: v5e
topology: v5e:2x2
jax: 0.10.0
libtpu: 0.0.40
codegen_flags: <defaults>
</compile_context>

<pallas_src>
import jax
import jax.numpy as jnp
from jax.experimental import pallas as pl
from jax.experimental.pallas import tpu as pltpu


LANE = 128                            # vreg lane width (fast axis)
TILE_BYTES = 4 * 1024 * 1024          # target data bytes per VMEM buffer
MIN_SPLIT_BYTES = 256 * 1024          # only force a 2-way split if each half >= this
VMEM_LIMIT_BYTES = 32 * 1024 * 1024   # double-buffered in+out (~16 MiB) + headroom


def _abs_kernel(x_ref, o_ref):
    # Elementwise |x| on one VMEM tile (VPU, purely memory-bound).
    o_ref[...] = jnp.abs(x_ref[...])


def _round_up(v, m):
    return ((v + m - 1) // m) * m


def _compiler_params():
    return pltpu.CompilerParams(
        dimension_semantics=("parallel",),
        vmem_limit_bytes=VMEM_LIMIT_BYTES,
    )


def view_between_op(x, new_shape, *, donate=False):
    """Pallas equivalent of ViewBetweenOpModule.forward.

    new_shape must be static (JAX shapes are static); may contain -1.
    Set donate=True only if the caller donates x (enables in-place abs).
    """
    new_shape = tuple(int(d) for d in new_shape)
    dtype = x.dtype
    itemsize = jnp.dtype(dtype).itemsize
    # Packed sublane multiple: 8 for f32, 16 for bf16, 32 for int8/fp8.
    sublane = 8 * max(1, 4 // itemsize)

    flat = x.reshape(-1)               # row-major flatten: metadata-only
    n = flat.shape[0]

    cost = pl.CostEstimate(flops=0, transcendentals=0,
                           bytes_accessed=2 * n * itemsize)
    alias = {0: 0} if donate else {}

    if n % LANE == 0:
        # ---- Fast path: lane-aligned -> lane-dense (rows, 128) slab --------
        rows = n // LANE
        max_tile_rows = max(
            sublane, (TILE_BYTES // (LANE * itemsize)) // sublane * sublane)
        if rows > max_tile_rows:
            tile_rows = max_tile_rows
        else:
            # Whole array fits one tile: split in two only if each half is big
            # enough to be worth the extra grid step (feeds both v7x TCs).
            half = _round_up(-(-rows // 2), sublane)
            min_split_rows = _round_up(
                -(-MIN_SPLIT_BYTES // (LANE * itemsize)), sublane)
            tile_rows = half if half >= min_split_rows else rows
        grid = (pl.cdiv(rows, tile_rows),)

        x2d = flat.reshape(rows, LANE)
        out2d = pl.pallas_call(
            _abs_kernel,
            out_shape=jax.ShapeDtypeStruct((rows, LANE), dtype),
            grid=grid,
            in_specs=[pl.BlockSpec((tile_rows, LANE), lambda i: (i, 0))],
            out_specs=pl.BlockSpec((tile_rows, LANE), lambda i: (i, 0)),
            compiler_params=_compiler_params(),
            cost_estimate=cost,
            input_output_aliases=alias,
        )(x2d)
        out_flat = out2d.reshape(-1)
    else:
        # ---- Ragged path: no pad/slice HBM passes ---------------------------
        # Present the flat data as (1, n); blocks are (1, tile) with tile a
        # multiple of 128, and Pallas masks the ragged final block's stores.
        # Still exactly 1 HBM read + 1 HBM write of n elements.
        # TODO(synk): a masked-store final tile on a lane-dense (rows, 128)
        # view would recover full sublane packing for this rare case.
        x2d = flat.reshape(1, n)
        tile = min(_round_up(n, LANE), 64 * 1024)   # multiple of 128
        grid = (pl.cdiv(n, tile),)
        out2d = pl.pallas_call(
            _abs_kernel,
            out_shape=jax.ShapeDtypeStruct((1, n), dtype),
            grid=grid,
            in_specs=[pl.BlockSpec((1, tile), lambda i: (0, i))],
            out_specs=pl.BlockSpec((1, tile), lambda i: (0, i)),
            compiler_params=_compiler_params(),
            cost_estimate=cost,
            input_output_aliases=alias,
        )(x2d)
        out_flat = out2d.reshape(-1)

    # torch.reshape(abs(x), new_shape) followed by the (idempotent) second
    # abs -- numerically identical to the original module's output.
    return out_flat.reshape(new_shape)


if __name__ == "__main__":
    key = jax.random.PRNGKey(0)
    x = jax.random.normal(key, (2, 4, 16, 16), dtype=jnp.float32)
    new_shape = (2, 4, 256)

    out = jax.block_until_ready(view_between_op(x, new_shape))

    # Reference check: same semantics as the torch module.
    ref = jnp.abs(jnp.reshape(jnp.abs(x), new_shape))
    assert out.shape == ref.shape
    assert out.dtype == ref.dtype
    assert jnp.allclose(out, ref), "mismatch vs reference"

    print("KERNEL_OK")
</pallas_src>

<mosaic_0001>
module attributes {stable_mosaic.version = 11 : i64} {
  func.func @_abs_kernel(%arg0: i32, %arg1: memref<16x128xf32, #tpu.memory_space<vmem>>, %arg2: memref<16x128xf32, #tpu.memory_space<vmem>>) attributes {dimension_semantics = [#tpu.dimension_semantics<parallel>], iteration_bounds = array<i64: 1>, scalar_prefetch = 0 : i64, scratch_operands = 0 : i64, tpu.core_type = #tpu.core_type<tc>, window_params = [{transform_indices = @transform_0, window_bounds = array<i64: 16, 128>}, {transform_indices = @transform_1, window_bounds = array<i64: 16, 128>}]} {
    %c0 = arith.constant 0 : index
    %c0_0 = arith.constant 0 : index
    %0 = vector.load %arg1[%c0, %c0_0] : memref<16x128xf32, #tpu.memory_space<vmem>>, vector<16x128xf32>
    %1 = math.absf %0 : vector<16x128xf32>
    %c0_1 = arith.constant 0 : index
    %c0_2 = arith.constant 0 : index
    %2 = vector.load %arg2[%c0_1, %c0_2] : memref<16x128xf32, #tpu.memory_space<vmem>>, vector<16x128xf32>
    tpu.vector_store %arg2[%c0_1, %c0_2], %1 {strides = array<i32>} : memref<16x128xf32, #tpu.memory_space<vmem>>, vector<16x128xf32>,
    return
  }
  func.func @transform_0(%arg0: i32) -> (i32, i32) {
    %c0_i32 = arith.constant 0 : i32
    %c0_i32_0 = arith.constant 0 : i32
    return %arg0, %c0_i32 : i32, i32
  }
  func.func @transform_1(%arg0: i32) -> (i32, i32) {
    %c0_i32 = arith.constant 0 : i32
    %c0_i32_0 = arith.constant 0 : i32
    return %arg0, %c0_i32 : i32, i32
  }
}

</mosaic_0001>

<llo_original>
// kernel: tpu_custom_call.1
$region0: #{tpu_custom_call.1}
  #allocation0 [shape = 'u32[]', space=smem, size = 0x4, offset = 0x4, fixed_abs, tag = 'smem constant byte address 0x4 - core index']
  #allocation1 [shape = 'u32[72,128]{1,0:T(1,128)}', space=vmem, size = 0x9000, scoped, tag = 'internal scratch']
  %s0 = inlined_call_operand.hbm [shape: f32[16,128], index: 0, kind: input, shape index: {}]
  %s1 = inlined_call_operand.hbm [shape: f32[16,128], index: 1, kind: output, shape index: {}]
  %s2 = sld [smem:[#allocation0]]
  $region18: #{tpu_custom_call.1} parent=0
    _
  %s4 = ssub.s32 1, %s2
  %s5 = scalar_select 0, %s4, %s2
  $region1: #{tpu_custom_call.1} parent=0
    #allocation2 [shape = 'u8[8192]{0}', space=vmem, size = 0x2000, scoped, tag = 'input window, operand 0, single buffered']
    #allocation3 [shape = 's32[1]{0}', space=sflag, size = 0x4, scoped, tag = 'scoped memory for tpu_custom_call.1']
    #allocation4 [shape = 's32[1]{0}', space=sflag, size = 0x4, scoped, tag = 'scoped memory for tpu_custom_call.1']
    #allocation5 [shape = 'u8[8192]{0}', space=vmem, size = 0x2000, scoped, tag = 'output window, operand 0, single buffered']
    %6 = vsyncpa [#allocation3], 0
    %7 = vsyncpa [#allocation4], 0
    // Predicated region
    $region2: #{tpu_custom_call.1} parent=1 // pred_check
      _
    $region3: #{tpu_custom_call.1} parent=1 // pred_check_branch
      %9 = sbr.rel (0) target = $region5
    $region4: #{tpu_custom_call.1} parent=1 // pred_region
      %11 = vsyncadd [#allocation3], 0
      %s12 = sshll.u32 %s0, 4
      %s13 = int_to_ptr.hbm [resolvable:$true] %s12
      %s14 = sshll.u32 [#allocation2], 4
      %s15 = int_to_ptr.vmem [resolvable:$true] %s14
      %20 = dma.hbm_to_vmem [thread:$0]  %s13, 256, %s15, [#allocation3], 128, 128, 8
    $region5: #{tpu_custom_call.1} parent=1 // pred_fallthru
      _
    // Predicated region
    $region6: #{tpu_custom_call.1} parent=1 // pred_check
      _
    $region7: #{tpu_custom_call.1} parent=1 // pred_check_branch
      %22 = sbr.rel (0) target = $region9
    $region8: #{tpu_custom_call.1} parent=1 // pred_region
      %24 = dma.done [#allocation3], 256
    $region9: #{tpu_custom_call.1} parent=1 // pred_fallthru
      _
    %v25 = vld [vmem:[#allocation2] sm:$0xff]
    %v26 = vld [vmem:[#allocation2 + $0x8] sm:$0xff]
    %v27 = vand.u32 2147483647, %v25
    %v28 = vand.u32 2147483647, %v26
    %29 = vst [vmem:[#allocation5] sm:$0xff] %v27
    %30 = vst [vmem:[#allocation5 + $0x8] sm:$0xff] %v28
    // Predicated region
    $region10: #{tpu_custom_call.1} parent=1 // pred_check
      _
    $region11: #{tpu_custom_call.1} parent=1 // pred_check_branch
      %32 = sbr.rel (0) target = $region13
    $region12: #{tpu_custom_call.1} parent=1 // pred_region
      %34 = vsyncadd [#allocation4], 0
      %s35 = sshll.u32 [#allocation5], 4
      %s36 = int_to_ptr.vmem [resolvable:$true] %s35
      %s37 = sshll.u32 %s1, 4
      %s38 = int_to_ptr.hbm [resolvable:$true] %s37
      %43 = dma.vmem_to_hbm [thread:$0]  %s36, 256, %s38, [#allocation4], 128, 128, 8
    $region13: #{tpu_custom_call.1} parent=1 // pred_fallthru
      _
    // Predicated region
    $region14: #{tpu_custom_call.1} parent=1 // pred_check
      _
    $region15: #{tpu_custom_call.1} parent=1 // pred_check_branch
      %45 = sbr.rel (0) target = $region17
    $region16: #{tpu_custom_call.1} parent=1 // pred_region
      %47 = dma.done [#allocation4], 256
    $region17: #{tpu_custom_call.1} parent=1 // pred_fallthru
      _
    %48 = vsyncpa [#allocation3], 1
    %49 = vsyncpa [#allocation4], 1

</llo_original>
